<compile_context>
chip_gen: v5e
topology: v5e:2x2
jax: 0.10.0
libtpu: 0.0.40
codegen_flags: <defaults>
</compile_context>

<pallas_src>
import jax
import jax.numpy as jnp
from jax.experimental import pallas as pl
from jax.experimental.pallas import tpu as pltpu


# ----------------------------------------------------------------------------
# Helpers
# ----------------------------------------------------------------------------

def _round_up(x, m):
    return ((x + m - 1) // m) * m


def _pad2d(x, rows, cols):
    """Zero-pad a 2D array up to (rows, cols)."""
    r, c = x.shape
    if r == rows and c == cols:
        return x
    return jnp.pad(x, ((0, rows - r), (0, cols - c)))


# ----------------------------------------------------------------------------
# Fused MLP Pallas kernel
# ----------------------------------------------------------------------------

def _discriminator_kernel(x_ref, w1_ref, b1_ref, w2_ref, b2_ref,
                          w3t_ref, b3_ref, o_ref):
    """One batch tile of the fused 3-layer MLP.

    x_ref  : (tm, Lp)  f32   Lp = latent rounded to 8 sublanes only (no 128 pad)
    w1_ref : (Lp, Dp)  f32   small, exact
    b1_ref : (1, Dp)   f32
    w2_ref : (Dp, Dp)  bf16  resident MXU operand, f32 accumulation
    b2_ref : (1, Dp)   f32
    w3t_ref: (1, Dp)   f32   third layer as a single row (mul + lane reduce)
    b3_ref : (1, 1)    f32
    o_ref  : (tm, 1)   f32   single real output column (no (tm,128) slab)
    """
    # ---- layer 1: Linear + LeakyReLU(0.2) ----
    h = jnp.dot(x_ref[...], w1_ref[...],
                preferred_element_type=jnp.float32) + b1_ref[...]
    h = jnp.maximum(h, 0.2 * h)

    # ---- layer 2: Linear (bf16 MXU, f32 acc) + LeakyReLU(0.2) ----
    h = jnp.dot(h.astype(w2_ref.dtype), w2_ref[...],
                preferred_element_type=jnp.float32) + b2_ref[...]
    h = jnp.maximum(h, 0.2 * h)

    # ---- layer 3: single output neuron -> VPU mul + XLU lane reduce ----
    z = jnp.sum(h * w3t_ref[...], axis=-1, keepdims=True) + b3_ref[...]

    # sigmoid: EUP exp + approx reciprocal (EUP slot), no f32 divide
    o_ref[...] = pl.reciprocal(1.0 + jnp.exp(-z), approx=True)


def _fused_mlp(x_p, w1, b1, w2, b2, w3t, b3, *, tm):
    """x_p: (Mp, Lp) f32. Returns (Mp, 1) f32."""
    Mp, Lp = x_p.shape
    Dp = w1.shape[1]
    grid = (Mp // tm,)

    return pl.pallas_call(
        _discriminator_kernel,
        out_shape=jax.ShapeDtypeStruct((Mp, 1), jnp.float32),
        grid_spec=pltpu.PrefetchScalarGridSpec(
            num_scalar_prefetch=0,
            grid=grid,
            in_specs=[
                pl.BlockSpec((tm, Lp), lambda i: (i, 0)),   # x tile (K unpadded)
                pl.BlockSpec((Lp, Dp), lambda i: (0, 0)),   # W1 (resident)
                pl.BlockSpec((1, Dp), lambda i: (0, 0)),    # b1
                pl.BlockSpec((Dp, Dp), lambda i: (0, 0)),   # W2 (resident)
                pl.BlockSpec((1, Dp), lambda i: (0, 0)),    # b2
                pl.BlockSpec((1, Dp), lambda i: (0, 0)),    # W3^T row
                pl.BlockSpec((1, 1), lambda i: (0, 0)),     # b3
            ],
            out_specs=pl.BlockSpec((tm, 1), lambda i: (i, 0)),
        ),
        compiler_params=pltpu.CompilerParams(
            dimension_semantics=("parallel",)),
    )(x_p, w1, b1, w2, b2, w3t, b3)


# ----------------------------------------------------------------------------
# Discriminator module (parameters initialized like torch.nn.Linear defaults)
# ----------------------------------------------------------------------------

class DiscriminatorPallas:
    def __init__(self, latent_size, d=128, key=None):
        self.latent_size = latent_size
        self.d = d
        key = jax.random.PRNGKey(42) if key is None else key
        ks = jax.random.split(key, 6)

        def lin_init(kw, kb, fan_in, fan_out):
            bound = 1.0 / jnp.sqrt(float(fan_in))
            w = jax.random.uniform(kw, (fan_in, fan_out), jnp.float32,
                                   -bound, bound)
            b = jax.random.uniform(kb, (fan_out,), jnp.float32, -bound, bound)
            return w, b

        # f32 master params (also used by the pure-JAX reference)
        self.w1, self.b1 = lin_init(ks[0], ks[1], latent_size, d)
        self.w2, self.b2 = lin_init(ks[2], ks[3], d, d)
        self.w3, self.b3 = lin_init(ks[4], ks[5], d, 1)

        # Latent (K) is only sublane-aligned (multiple of 8), NOT padded to 128.
        self.Lp = _round_up(latent_size, 8)
        # Hidden dim stays lane-dense (multiple of 128); no-op for d=128.
        self.Dp = _round_up(d, 128)

        # Zero padding keeps padded lanes exactly 0 through LeakyReLU and the
        # final reduce, so they never contaminate real outputs.
        self.w1_p = _pad2d(self.w1, self.Lp, self.Dp)                      # f32
        self.b1_p = _pad2d(self.b1.reshape(1, -1), 1, self.Dp)             # f32
        self.w2_p = _pad2d(self.w2, self.Dp, self.Dp).astype(jnp.bfloat16)
        self.b2_p = _pad2d(self.b2.reshape(1, -1), 1, self.Dp)             # f32
        self.w3t_p = _pad2d(self.w3.reshape(1, -1), 1, self.Dp)            # f32
        self.b3_p = self.b3.reshape(1, 1)                                  # f32

    def __call__(self, x):
        """x: (batch, latent_size) f32 -> (batch, 1) f32."""
        M, L = x.shape
        x = x.astype(jnp.float32)

        # Batch tiling: large mem-bound tiles (16-aligned for bf16 sublane
        # packing); for big batches guarantee >=2 "parallel" grid steps so
        # v7x's two TensorCores both get work.
        M16 = _round_up(max(M, 16), 16)
        if M16 <= 512:
            tm = M16
        else:
            tm = min(1024, _round_up((M16 + 1) // 2, 16))
        Mp = _round_up(M16, tm)

        # Only trivial batch-tail (and, if latent % 8 != 0, tiny K) zero pad —
        # no 128-lane K inflation and no separate bf16 cast pre-pass.
        if Mp != M or self.Lp != L:
            x = jnp.pad(x, ((0, Mp - M), (0, self.Lp - L)))

        out = _fused_mlp(x, self.w1_p, self.b1_p, self.w2_p, self.b2_p,
                         self.w3t_p, self.b3_p, tm=tm)
        return out[:M]

    def reference(self, x):
        """Pure-JAX f32 reference of the torch forward (for validation)."""
        h = x @ self.w1 + self.b1
        h = jnp.where(h > 0.0, h, 0.2 * h)
        h = h @ self.w2 + self.b2
        h = jnp.where(h > 0.0, h, 0.2 * h)
        z = h @ self.w3 + self.b3
        return 1.0 / (1.0 + jnp.exp(-z))


# ----------------------------------------------------------------------------
# Main
# ----------------------------------------------------------------------------

if __name__ == "__main__":
    batch = 2
    latent_size = 16
    d = 128  # module default

    key = jax.random.PRNGKey(0)
    x = jax.random.normal(key, (batch, latent_size), jnp.float32)

    disc = DiscriminatorPallas(latent_size, d=d, key=jax.random.PRNGKey(42))
    out = jax.block_until_ready(disc(x))

    expected_shape = (batch, 1)
    assert out.shape == expected_shape, (out.shape, expected_shape)
    assert bool(jnp.all(jnp.isfinite(out)))
    assert bool(jnp.all(out > 0.0)) and bool(jnp.all(out < 1.0))

    # numerical check against the pure-JAX f32 reference (bf16 layer-2 tolerance)
    ref = disc.reference(x)
    assert bool(jnp.all(jnp.abs(out - ref) < 2e-2)), (out, ref)

    print("KERNEL_OK")
</pallas_src>

<mosaic_0001>
module attributes {stable_mosaic.version = 11 : i64} {
  func.func @_discriminator_kernel(%arg0: i32, %arg1: memref<16x16xf32, #tpu.memory_space<vmem>>, %arg2: memref<16x128xf32, #tpu.memory_space<vmem>>, %arg3: memref<1x128xf32, #tpu.memory_space<vmem>>, %arg4: memref<128x128xbf16, #tpu.memory_space<vmem>>, %arg5: memref<1x128xf32, #tpu.memory_space<vmem>>, %arg6: memref<1x128xf32, #tpu.memory_space<vmem>>, %arg7: memref<1x1xf32, #tpu.memory_space<vmem>>, %arg8: memref<16x1xf32, #tpu.memory_space<vmem>>) attributes {dimension_semantics = [#tpu.dimension_semantics<parallel>], iteration_bounds = array<i64: 1>, scalar_prefetch = 0 : i64, scratch_operands = 0 : i64, tpu.core_type = #tpu.core_type<tc>, window_params = [{transform_indices = @transform_0, window_bounds = array<i64: 16, 16>}, {pipeline_mode = #tpu.pipeline_mode<synchronous>, transform_indices = @transform_1, window_bounds = array<i64: 16, 128>}, {pipeline_mode = #tpu.pipeline_mode<synchronous>, transform_indices = @transform_2, window_bounds = array<i64: 1, 128>}, {pipeline_mode = #tpu.pipeline_mode<synchronous>, transform_indices = @transform_3, window_bounds = array<i64: 128, 128>}, {pipeline_mode = #tpu.pipeline_mode<synchronous>, transform_indices = @transform_4, window_bounds = array<i64: 1, 128>}, {pipeline_mode = #tpu.pipeline_mode<synchronous>, transform_indices = @transform_5, window_bounds = array<i64: 1, 128>}, {pipeline_mode = #tpu.pipeline_mode<synchronous>, transform_indices = @transform_6, window_bounds = array<i64: 1, 1>}, {transform_indices = @transform_7, window_bounds = array<i64: 16, 1>}]} {
    %c0 = arith.constant 0 : index
    %c0_0 = arith.constant 0 : index
    %0 = vector.load %arg1[%c0, %c0_0] : memref<16x16xf32, #tpu.memory_space<vmem>>, vector<16x16xf32>
    %c0_1 = arith.constant 0 : index
    %c0_2 = arith.constant 0 : index
    %1 = vector.load %arg2[%c0_1, %c0_2] : memref<16x128xf32, #tpu.memory_space<vmem>>, vector<16x128xf32>
    %cst = arith.constant dense<0.000000e+00> : vector<16x128xf32>
    %2 = tpu.matmul %0, %1, %cst {dimension_numbers = #tpu.dot_dimension_numbers<[1], [0], [0], [1], [0, 0, 1, 1], [], []>} : vector<16x16xf32>, vector<16x128xf32>, vector<16x128xf32> -> vector<16x128xf32>
    %c0_3 = arith.constant 0 : index
    %c0_4 = arith.constant 0 : index
    %3 = vector.load %arg3[%c0_3, %c0_4] : memref<1x128xf32, #tpu.memory_space<vmem>>, vector<1x128xf32>
    %4 = vector.broadcast %3 : vector<1x128xf32> to vector<16x128xf32>
    %5 = arith.addf %2, %4 : vector<16x128xf32>
    %cst_5 = arith.constant 2.000000e-01 : f32
    %6 = vector.broadcast %cst_5 : f32 to vector<16x128xf32>
    %7 = arith.mulf %6, %5 : vector<16x128xf32>
    %8 = arith.maximumf %5, %7 : vector<16x128xf32>
    %9 = arith.truncf %8 : vector<16x128xf32> to vector<16x128xbf16>
    %c0_6 = arith.constant 0 : index
    %c0_7 = arith.constant 0 : index
    %10 = vector.load %arg4[%c0_6, %c0_7] : memref<128x128xbf16, #tpu.memory_space<vmem>>, vector<128x128xbf16>
    %cst_8 = arith.constant dense<0.000000e+00> : vector<16x128xf32>
    %11 = tpu.matmul %9, %10, %cst_8 {dimension_numbers = #tpu.dot_dimension_numbers<[1], [0], [0], [1], [0, 0, 1, 1], [], []>} : vector<16x128xbf16>, vector<128x128xbf16>, vector<16x128xf32> -> vector<16x128xf32>
    %c0_9 = arith.constant 0 : index
    %c0_10 = arith.constant 0 : index
    %12 = vector.load %arg5[%c0_9, %c0_10] : memref<1x128xf32, #tpu.memory_space<vmem>>, vector<1x128xf32>
    %13 = vector.broadcast %12 : vector<1x128xf32> to vector<16x128xf32>
    %14 = arith.addf %11, %13 : vector<16x128xf32>
    %cst_11 = arith.constant 2.000000e-01 : f32
    %15 = vector.broadcast %cst_11 : f32 to vector<16x128xf32>
    %16 = arith.mulf %15, %14 : vector<16x128xf32>
    %17 = arith.maximumf %14, %16 : vector<16x128xf32>
    %c0_12 = arith.constant 0 : index
    %c0_13 = arith.constant 0 : index
    %18 = vector.load %arg6[%c0_12, %c0_13] : memref<1x128xf32, #tpu.memory_space<vmem>>, vector<1x128xf32>
    %19 = vector.broadcast %18 : vector<1x128xf32> to vector<16x128xf32>
    %20 = arith.mulf %17, %19 : vector<16x128xf32>
    %cst_14 = arith.constant dense<0.000000e+00> : vector<16xf32>
    %21 = vector.multi_reduction <add>, %20, %cst_14 [1] : vector<16x128xf32> to vector<16xf32>
    %22 = vector.shape_cast %21 : vector<16xf32> to vector<16x1xf32>
    %c0_15 = arith.constant 0 : index
    %c0_16 = arith.constant 0 : index
    %23 = vector.load %arg7[%c0_15, %c0_16] : memref<1x1xf32, #tpu.memory_space<vmem>>, vector<1x1xf32>
    %24 = vector.broadcast %23 : vector<1x1xf32> to vector<16x1xf32>
    %25 = arith.addf %22, %24 : vector<16x1xf32>
    %cst_17 = arith.constant 0.000000e+00 : f32
    %26 = vector.broadcast %cst_17 : f32 to vector<16x1xf32>
    %27 = arith.subf %26, %25 : vector<16x1xf32>
    %28 = math.exp %27 : vector<16x1xf32>
    %cst_18 = arith.constant 1.000000e+00 : f32
    %29 = vector.broadcast %cst_18 : f32 to vector<16x1xf32>
    %30 = arith.addf %29, %28 : vector<16x1xf32>
    %31 = tpu.reciprocal %30 {approx = true} : vector<16x1xf32> -> vector<16x1xf32>
    %c0_19 = arith.constant 0 : index
    %c0_20 = arith.constant 0 : index
    %32 = vector.load %arg8[%c0_19, %c0_20] : memref<16x1xf32, #tpu.memory_space<vmem>>, vector<16x1xf32>
    tpu.vector_store %arg8[%c0_19, %c0_20], %31 {strides = array<i32>} : memref<16x1xf32, #tpu.memory_space<vmem>>, vector<16x1xf32>,
    return
  }
  func.func @transform_0(%arg0: i32) -> (i32, i32) {
    %c0_i32 = arith.constant 0 : i32
    %c0_i32_0 = arith.constant 0 : i32
    return %arg0, %c0_i32 : i32, i32
  }
  func.func @transform_1(%arg0: i32) -> (i32, i32) {
    %c0_i32 = arith.constant 0 : i32
    %c0_i32_0 = arith.constant 0 : i32
    %c0_i32_1 = arith.constant 0 : i32
    return %c0_i32, %c0_i32_0 : i32, i32
  }
  func.func @transform_2(%arg0: i32) -> (i32, i32) {
    %c0_i32 = arith.constant 0 : i32
    %c0_i32_0 = arith.constant 0 : i32
    %c0_i32_1 = arith.constant 0 : i32
    return %c0_i32, %c0_i32_0 : i32, i32
  }
  func.func @transform_3(%arg0: i32) -> (i32, i32) {
    %c0_i32 = arith.constant 0 : i32
    %c0_i32_0 = arith.constant 0 : i32
    %c0_i32_1 = arith.constant 0 : i32
    return %c0_i32, %c0_i32_0 : i32, i32
  }
  func.func @transform_4(%arg0: i32) -> (i32, i32) {
    %c0_i32 = arith.constant 0 : i32
    %c0_i32_0 = arith.constant 0 : i32
    %c0_i32_1 = arith.constant 0 : i32
    return %c0_i32, %c0_i32_0 : i32, i32
  }
  func.func @transform_5(%arg0: i32) -> (i32, i32) {
    %c0_i32 = arith.constant 0 : i32
    %c0_i32_0 = arith.constant 0 : i32
    %c0_i32_1 = arith.constant 0 : i32
    return %c0_i32, %c0_i32_0 : i32, i32
  }
  func.func @transform_6(%arg0: i32) -> (i32, i32) {
    %c0_i32 = arith.constant 0 : i32
    %c0_i32_0 = arith.constant 0 : i32
    %c0_i32_1 = arith.constant 0 : i32
    return %c0_i32, %c0_i32_0 : i32, i32
  }
  func.func @transform_7(%arg0: i32) -> (i32, i32) {
    %c0_i32 = arith.constant 0 : i32
    %c0_i32_0 = arith.constant 0 : i32
    return %arg0, %c0_i32 : i32, i32
  }
}

</mosaic_0001>

<llo_original>
// kernel: tpu_custom_call.1
$region0: #{tpu_custom_call.1}
  #allocation0 [shape = 'u32[]', space=smem, size = 0x4, offset = 0x4, fixed_abs, tag = 'smem constant byte address 0x4 - core index']
  #allocation1 [shape = 'u32[72,128]{1,0:T(1,128)}', space=vmem, size = 0x9000, scoped, tag = 'internal scratch']
  #allocation2 [shape = 'f32[1,1]{1,0:T(1,128)S(1)}', space=vmem, size = 0x200, scoped, tag = 'scoped memory for tpu_custom_call.1']
  %s0 = inlined_call_operand.hbm [shape: f32[16,16], index: 0, kind: input, shape index: {}]
  %s1 = inlined_call_operand.hbm [shape: f32[16,128], index: 1, kind: input, shape index: {}]
  %s2 = inlined_call_operand.vmem [shape: f32[1,128], index: 2, kind: input, shape index: {}]
  %s3 = inlined_call_operand.hbm [shape: bf16[128,128], index: 3, kind: input, shape index: {}]
  %s4 = inlined_call_operand.vmem [shape: f32[1,128], index: 4, kind: input, shape index: {}]
  %s5 = inlined_call_operand.vmem [shape: f32[1,128], index: 5, kind: input, shape index: {}]
  %s6 = inlined_call_operand.<no memory space> [shape: f32[1,1], index: 6, kind: input, shape index: {}]
  %s7 = inlined_call_operand.vmem [shape: f32[16,1], index: 7, kind: output, shape index: {}]
  %s8 = sld [smem:[#allocation0]]
  $region50: #{tpu_custom_call.1} parent=0
    _
  %s10 = ssub.s32 1, %s8
  %s11 = scalar_select 0, %s10, %s8
  %v12 = vstv %s6
  %13 = vst [vmem:[#allocation2] sm:$0x1] %v12
  $region1: #{tpu_custom_call.1} parent=0
    #allocation3 [shape = 'u8[8192]{0}', space=vmem, size = 0x2000, scoped, tag = 'input window, operand 0, single buffered']
    #allocation4 [shape = 's32[1]{0}', space=sflag, size = 0x4, scoped, tag = 'scoped memory for tpu_custom_call.1']
    #allocation5 [shape = 'u8[8192]{0}', space=vmem, size = 0x2000, scoped, tag = 'input window, operand 1, single buffered']
    #allocation6 [shape = 's32[1]{0}', space=sflag, size = 0x4, scoped, tag = 'scoped memory for tpu_custom_call.1']
    #allocation7 [shape = 'u8[32768]{0}', space=vmem, size = 0x8000, scoped, tag = 'input window, operand 3, single buffered']
    %14 = vsyncpa [#allocation4], 0
    %15 = vsyncpa [#allocation6], 0
    // Predicated region
    $region2: #{tpu_custom_call.1} parent=1 // pred_check
      _
    $region3: #{tpu_custom_call.1} parent=1 // pred_check_branch
      %17 = sbr.rel (0) target = $region5
    $region4: #{tpu_custom_call.1} parent=1 // pred_region
      %19 = vsyncadd [#allocation4], 0
      %s20 = sshll.u32 %s0, 4
      %s21 = int_to_ptr.hbm [resolvable:$true] %s20
      %s22 = sshll.u32 [#allocation3], 4
      %s23 = int_to_ptr.vmem [resolvable:$true] %s22
      %28 = dma.hbm_to_vmem [thread:$0]  %s21, 256, %s23, [#allocation4], 128, 128, 8
    $region5: #{tpu_custom_call.1} parent=1 // pred_fallthru
      _
    // Predicated region
    $region6: #{tpu_custom_call.1} parent=1 // pred_check
      _
    $region7: #{tpu_custom_call.1} parent=1 // pred_check_branch
      %30 = sbr.rel (0) target = $region9
    $region8: #{tpu_custom_call.1} parent=1 // pred_region
      %32 = vsyncadd [#allocation6], 0
      %s33 = sshll.u32 %s1, 4
      %s34 = int_to_ptr.hbm [resolvable:$true] %s33
      %s35 = sshll.u32 [#allocation5], 4
      %s36 = int_to_ptr.vmem [resolvable:$true] %s35
      %41 = dma.hbm_to_vmem [thread:$0]  %s34, 256, %s36, [#allocation6], 128, 128, 8
    $region9: #{tpu_custom_call.1} parent=1 // pred_fallthru
      _
    // Predicated region
    $region10: #{tpu_custom_call.1} parent=1 // pred_check
      _
    $region11: #{tpu_custom_call.1} parent=1 // pred_check_branch
      %43 = sbr.rel (0) target = $region13
    $region12: #{tpu_custom_call.1} parent=1 // pred_region
      _
    $region13: #{tpu_custom_call.1} parent=1 // pred_fallthru
      _
    // Predicated region
    $region14: #{tpu_custom_call.1} parent=1 // pred_check
      _
    $region15: #{tpu_custom_call.1} parent=1 // pred_check_branch
      %45 = sbr.rel (0) target = $region17
    $region16: #{tpu_custom_call.1} parent=1 // pred_region
      %47 = vsyncadd [#allocation6], 0
      %s48 = sshll.u32 %s3, 4
      %s49 = int_to_ptr.hbm [resolvable:$true] %s48
      %s50 = sshll.u32 [#allocation7], 4
      %s51 = int_to_ptr.vmem [resolvable:$true] %s50
      %56 = dma.hbm_to_vmem [thread:$0]  %s49, 1024, %s51, [#allocation6], 64, 64, 4
    $region17: #{tpu_custom_call.1} parent=1 // pred_fallthru
      _
    // Predicated region
    $region18: #{tpu_custom_call.1} parent=1 // pred_check
      _
    $region19: #{tpu_custom_call.1} parent=1 // pred_check_branch
      %58 = sbr.rel (0) target = $region21
    $region20: #{tpu_custom_call.1} parent=1 // pred_region
      _
    $region21: #{tpu_custom_call.1} parent=1 // pred_fallthru
      _
    // Predicated region
    $region22: #{tpu_custom_call.1} parent=1 // pred_check
      _
    $region23: #{tpu_custom_call.1} parent=1 // pred_check_branch
      %60 = sbr.rel (0) target = $region25
    $region24: #{tpu_custom_call.1} parent=1 // pred_region
      _
    $region25: #{tpu_custom_call.1} parent=1 // pred_fallthru
      _
    // Predicated region
    $region26: #{tpu_custom_call.1} parent=1 // pred_check
      _
    $region27: #{tpu_custom_call.1} parent=1 // pred_check_branch
      %62 = sbr.rel (0) target = $region29
    $region28: #{tpu_custom_call.1} parent=1 // pred_region
      _
    $region29: #{tpu_custom_call.1} parent=1 // pred_fallthru
      _
    // Predicated region
    $region30: #{tpu_custom_call.1} parent=1 // pred_check
      _
    $region31: #{tpu_custom_call.1} parent=1 // pred_check_branch
      %64 = sbr.rel (0) target = $region33
    $region32: #{tpu_custom_call.1} parent=1 // pred_region
      %66 = dma.done [#allocation4], 256
    $region33: #{tpu_custom_call.1} parent=1 // pred_fallthru
      _
    // Predicated region
    $region34: #{tpu_custom_call.1} parent=1 // pred_check
      _
    $region35: #{tpu_custom_call.1} parent=1 // pred_check_branch
      %68 = sbr.rel (0) target = $region37
    $region36: #{tpu_custom_call.1} parent=1 // pred_region
      %70 = dma.done [#allocation6], 256
    $region37: #{tpu_custom_call.1} parent=1 // pred_fallthru
      _
    // Predicated region
    $region38: #{tpu_custom_call.1} parent=1 // pred_check
      _
    $region39: #{tpu_custom_call.1} parent=1 // pred_check_branch
      %72 = sbr.rel (0) target = $region41
    $region40: #{tpu_custom_call.1} parent=1 // pred_region
      %74 = dma.done [#allocation6], 1024
    $region41: #{tpu_custom_call.1} parent=1 // pred_fallthru
      _
    %v75 = vld [vmem:[#allocation3] sm:$0xff]
    %v76 = vld [vmem:[#allocation3 + $0x8] sm:$0xff]
    %v77 = vld [vmem:[#allocation5] sm:$0xff]
    %v78 = vld [vmem:[#allocation5 + $0x8] sm:$0xff]
    %v79 = vld [vmem:[%s2] sm:$0x1]
    %v81 = vperm.slane %v79, 0
    %vm83 = vcmask 130048
    %v85 = vsel %vm83, %v75, 0
    %v88 = vsel %vm83, %v76, 0
    %90 = vmatpush.msra.mxu0 0.0
    %91 = vmatpush.msra.mxu0 0.0
    %92 = vmatpush.msra.mxu0 0.0
    %93 = vmatpush.msra.mxu0 0.0
    %94 = vmatpush.msra.mxu0 0.0
    %95 = vmatpush.msra.mxu0 0.0
    %96 = vmatpush.msra.mxu0 0.0
    %97 = vmatpush.msra.mxu0 0.0
    %98 = vmatpush.msra.mxu0 0.0
    %99 = vmatpush.msra.mxu0 0.0
    %100 = vmatpush.msra.mxu0 0.0
    %101 = vmatpush.msra.mxu0 0.0
    %102 = vmatpush.msra.mxu0 0.0
    %103 = vmatpush.msra.mxu0 0.0
    %104 = vmatpush.msra.mxu0 %v78
    %105 = vmatpush.msra.mxu0 %v77
    %106 = vmatmul.f32.gmra.mxu0 %v85
    %v107 = vpop.f32.mrf.mxu0
    %v108 = vadd.f32 %v81, %v107
    %109 = vmatmul.f32.gmra.mxu0 %v88
    %v110 = vpop.f32.mrf.mxu0
    %v111 = vadd.f32 %v81, %v110
    %112 = vdwg.mxu0
    %v113 = vmul.f32 %v108, 0.2
    %v114 = vmul.f32 %v111, 0.2
    %v115 = vmax.f32 %v108, %v113
    %v116 = vmax.f32 %v111, %v114
    %v117 = vpack.c.bf16 %v116, %v115
    %v118 = vld [vmem:[#allocation7] sm:$0xf]
    %v119 = vld [vmem:[#allocation7 + $0x4] sm:$0xf]
    %v120 = vld [vmem:[#allocation7 + $0x8] sm:$0xf]
    %v121 = vld [vmem:[#allocation7 + $0xc] sm:$0xf]
    %v122 = vld [vmem:[#allocation7 + $0x10] sm:$0xf]
    %v123 = vld [vmem:[#allocation7 + $0x14] sm:$0xf]
    %v124 = vld [vmem:[#allocation7 + $0x18] sm:$0xf]
    %v125 = vld [vmem:[#allocation7 + $0x1c] sm:$0xf]
    %v126 = vld [vmem:[#allocation7 + $0x20] sm:$0xf]
    %v127 = vld [vmem:[#allocation7 + $0x24] sm:$0xf]
    %v128 = vld [vmem:[#allocation7 + $0x28] sm:$0xf]
    %v129 = vld [vmem:[#allocation7 + $0x2c] sm:$0xf]
    %v130 = vld [vmem:[#allocation7 + $0x30] sm:$0xf]
    %v131 = vld [vmem:[#allocation7 + $0x34] sm:$0xf]
    %v132 = vld [vmem:[#allocation7 + $0x38] sm:$0xf]
    %v133 = vld [vmem:[#allocation7 + $0x3c] sm:$0xf]
    %v134 = vld [vmem:[%s4] sm:$0x1]
    %v136 = vperm.slane %v134, 0
    %v154 = vunpack.c.l.b16 %v118
    %v155 = vunpack.c.l.b16 %v119
    %v156 = vunpack.c.l.b16 %v120
    %v157 = vunpack.c.l.b16 %v121
    %v158 = vunpack.c.l.b16 %v122
    %v159 = vunpack.c.l.b16 %v123
    %v160 = vunpack.c.l.b16 %v124
    %v161 = vunpack.c.l.b16 %v125
    %v162 = vunpack.c.l.b16 %v126
    %v163 = vunpack.c.l.b16 %v127
    %v164 = vunpack.c.l.b16 %v128
    %v165 = vunpack.c.l.b16 %v129
    %v166 = vunpack.c.l.b16 %v130
    %v167 = vunpack.c.l.b16 %v131
    %v168 = vunpack.c.l.b16 %v132
    %v169 = vunpack.c.l.b16 %v133
    %v170 = vpack.c.b16 %v155, %v154
    %v171 = vpack.c.b16 %v157, %v156
    %v172 = vpack.c.b16 %v159, %v158
    %v173 = vpack.c.b16 %v161, %v160
    %v174 = vpack.c.b16 %v163, %v162
    %v175 = vpack.c.b16 %v165, %v164
    %v176 = vpack.c.b16 %v167, %v166
    %v177 = vpack.c.b16 %v169, %v168
    %186 = vmatpush.bf16.msra.mxu0 %v177
    %187 = vmatpush.bf16.msra.mxu0 %v176
    %188 = vmatpush.bf16.msra.mxu0 %v175
    %189 = vmatpush.bf16.msra.mxu0 %v174
    %190 = vmatpush.bf16.msra.mxu0 %v173
    %191 = vmatpush.bf16.msra.mxu0 %v172
    %192 = vmatpush.bf16.msra.mxu0 %v171
    %193 = vmatpush.bf16.msra.mxu0 %v170
    %194 = vmatmul.bf16.gmra.mxu0 %v117
    %v195 = vpop.f32.mrf.mxu0
    %v196 = vadd.f32 %v136, %v195
    %v197 = vpop.f32.mrf.mxu0
    %v198 = vadd.f32 %v136, %v197
    %199 = vdwg.mxu0
    %v200 = vmul.f32 %v196, 0.2
    %v201 = vmul.f32 %v198, 0.2
    %v202 = vmax.f32 %v196, %v200
    %v203 = vmax.f32 %v198, %v201
    %v204 = vld [vmem:[%s5] sm:$0x1]
    %v206 = vperm.slane %v204, 0
    %v208 = vmul.f32 %v202, %v206
    %v209 = vmul.f32 %v203, %v206
    %210 = vadd.xlane.f32.xlu0 %v208
    %v211 = vpop.xlane.xlu0 %210
    %212 = vadd.xlane.f32.xlu0 %v209
    %v213 = vpop.xlane.xlu0 %212
    %v214 = vld [vmem:[#allocation2] sm:$0x1]
    %v216 = vperm.slane %v214, 0
    %v218 = vadd.f32 %v211, %v216
    %v219 = vadd.f32 %v213, %v216
    %v220 = vsub.f32 0.0, %v218
    %v221 = vsub.f32 0.0, %v219
    %v222 = vmul.f32 %v220, 1.442695
    %v223 = vpow.pop %v222
    %v224 = vmul.f32 %v221, 1.442695
    %v225 = vpow.pop %v224
    %v226 = vadd.f32 %v223, 1.0
    %v227 = vadd.f32 %v225, 1.0
    %v228 = vrcp.pop %v226
    %v229 = vrcp.pop %v227
    %vm230 = vcmask 7168
    %231 = vst.msk [vmem:[%s7] sm:$0xff] %vm230, %v228
    %232 = vst.msk [vmem:[%s7 + $0x8] sm:$0xff] %vm230, %v229
    // Predicated region
    $region42: #{tpu_custom_call.1} parent=1 // pred_check
      _
    $region43: #{tpu_custom_call.1} parent=1 // pred_check_branch
      %234 = sbr.rel (0) target = $region45
    $region44: #{tpu_custom_call.1} parent=1 // pred_region
      _
    $region45: #{tpu_custom_call.1} parent=1 // pred_fallthru
      _
    // Predicated region
    $region46: #{tpu_custom_call.1} parent=1 // pred_check
      _
    $region47: #{tpu_custom_call.1} parent=1 // pred_check_branch
      %236 = sbr.rel (0) target = $region49
    $region48: #{tpu_custom_call.1} parent=1 // pred_region
      _
    $region49: #{tpu_custom_call.1} parent=1 // pred_fallthru
      _
    %237 = vsyncpa [#allocation4], 1
    %238 = vsyncpa [#allocation6], 1

</llo_original>
